<compile_context>
chip_gen: v5e
topology: v5e:2x2
jax: 0.10.0
libtpu: 0.0.40
codegen_flags: <defaults>
</compile_context>

<pallas_src>
import functools

import jax
import jax.numpy as jnp
from jax import lax
from jax.experimental import pallas as pl
from jax.experimental.pallas import tpu as pltpu


_CHUNK = 8                 # sublanes per inner chunk: one f32 output vreg
_VMEM_BUDGET = 40 << 20    # double-buffered block budget (v7x-safe: 64 MiB/TC)


def _mlp_kernel(x_ref, w1_ref, b1_ref, w2_ref, b2_ref, o_ref):
    """One batch tile of the 6 -> 12 -> 1 MLP (batch on (sublane, lane)).

    x_ref : [6, TBS, 128] VMEM  (feature, sublane-group, lane) -- lane = batch
    o_ref : [TBS, 128]    VMEM
    w1_ref: [12, 6] SMEM, b1_ref: [12] SMEM, w2_ref: [12] SMEM, b2_ref: [1] SMEM
    """
    tbs = o_ref.shape[0]
    n_chunks = tbs // _CHUNK

    # Hoist every SMEM scalar weight read out of the chunk loop.
    w1 = [[w1_ref[j, i] for i in range(6)] for j in range(12)]
    b1 = [b1_ref[j] for j in range(12)]
    w2 = [w2_ref[j] for j in range(12)]
    b2 = b2_ref[0]

    def chunk_body(c, carry):
        s = pl.multiple_of(c * _CHUNK, _CHUNK)
        xs = x_ref[:, pl.ds(s, _CHUNK), :].astype(jnp.float32)   # [6, 8, 128]
        rows = [xs[i] for i in range(6)]
        # Initialize the accumulator with the fc2 bias (saves a trailing add).
        y = jnp.full((_CHUNK, 128), b2, jnp.float32)
        for j in range(12):                       # hidden units (unrolled)
            hj = rows[0] * w1[j][0]               # VPU scalar-broadcast FMAs
            for i in range(1, 6):
                hj = hj + rows[i] * w1[j][i]
            hj = jnp.maximum(hj + b1[j], 0.0)     # fc1 bias + ReLU (f32)
            y = y + hj * w2[j]                    # fc2 contraction
        o_ref[pl.ds(s, _CHUNK), :] = y.astype(o_ref.dtype)
        return carry

    # Short tiles get fully unrolled (LLO visibility); long tiles stay rolled
    # (each chunk body is already ~180 VALU ops, loop overhead is negligible).
    lax.fori_loop(0, n_chunks, chunk_body, 0, unroll=(n_chunks <= 8))


def _choose_tiling(S, x_bytes, tile_b):
    """Pick (tbs, grid_len, vmem_limit) for S sublane-groups of batch."""
    per_sg = 2 * (6 * 128 + 128) * x_bytes          # double-buffered bytes / group
    max_tbs = max(8, (_VMEM_BUDGET // per_sg) // 8 * 8)
    tbs = max(8, min(tile_b // 128, max_tbs, S)) // 8 * 8
    # Give the "parallel" batch axis >= 2 blocks whenever the batch is
    # non-trivial so v7x's two TensorCores both get work.
    if tbs >= S and S >= 16:
        tbs = ((S // 2 + 7) // 8) * 8
    grid_len = pl.cdiv(S, tbs)
    blk = tbs * (6 * 128 + 128) * x_bytes
    vmem_limit = int(min(48 << 20, max(2 * blk + (2 << 20), 16 << 20)))
    return tbs, grid_len, vmem_limit


def _forward_feature_major(x_fm, w1, b1_row, w2_row, b2_s, *, tbs, grid_len,
                           vmem_limit, out_dtype):
    """Core pallas_call. x_fm: [6, S, 128] feature-major, lane-dense batch."""
    S = x_fm.shape[1]
    smem = pl.BlockSpec(memory_space=pltpu.MemorySpace.SMEM)
    return pl.pallas_call(
        _mlp_kernel,
        out_shape=jax.ShapeDtypeStruct((S, 128), out_dtype),
        grid=(grid_len,),
        in_specs=[
            pl.BlockSpec((6, tbs, 128), lambda i: (0, i, 0)),   # x batch tile
            smem,                                               # w1 (resident)
            smem,                                               # b1 (resident)
            smem,                                               # w2 (resident)
            smem,                                               # b2 (resident)
        ],
        out_specs=pl.BlockSpec((tbs, 128), lambda i: (i, 0)),
        compiler_params=pltpu.CompilerParams(
            dimension_semantics=("parallel",),
            vmem_limit_bytes=vmem_limit,
        ),
    )(x_fm, w1, b1_row, w2_row, b2_s)


@functools.partial(jax.jit, static_argnames=("tile_b",))
def net_forward_feature_major(x_fm, w1, b1, w2, b2, *, tile_b=262144):
    """Fast path for producers that already emit x feature-major.

    x_fm: [6, S, 128]; batch row b lives at (sublane-group, lane) = (b//128, b%128).
    Returns [S, 128] in x_fm.dtype (row b at out[b//128, b%128]).
    """
    S = x_fm.shape[1]
    tbs, grid_len, vmem_limit = _choose_tiling(
        S, jnp.dtype(x_fm.dtype).itemsize, tile_b)
    return _forward_feature_major(
        x_fm, w1, b1.reshape(12), w2.reshape(12), b2.reshape(1),
        tbs=tbs, grid_len=grid_len, vmem_limit=vmem_limit, out_dtype=x_fm.dtype)


@functools.partial(jax.jit, static_argnames=("tile_b",))
def net_forward(x, w1, b1, w2, b2, *, tile_b=262144):
    """Forward pass of `Net`.

    x : [B, 6]; w1: [12, 6]; b1: [12]; w2: [1, 12]; b2: [1]  (PyTorch layout).
    Returns [B, 1] in x.dtype.
    """
    B, F = x.shape
    assert F == 6
    x_bytes = jnp.dtype(x.dtype).itemsize

    # Pad only to an (8 sublane x 128 lane) multiple -- never to tile_b multiples.
    Bp = pl.cdiv(B, 1024) * 1024
    S = Bp // 128
    tbs, grid_len, vmem_limit = _choose_tiling(S, x_bytes, tile_b)

    # Layout plumbing: pad + transpose to feature-major, lane-dense batch.
    # TODO(synk): when the producer can emit x feature-major ([6, B] or
    # [6, S, 128]), call net_forward_feature_major directly and skip this
    # extra HBM round-trip (it roughly doubles end-to-end HBM traffic here).
    xp = x if Bp == B else jnp.pad(x, ((0, Bp - B), (0, 0)))
    x_fm = xp.T.reshape(6, S, 128)

    out = _forward_feature_major(
        x_fm, w1, b1.reshape(12), w2.reshape(12), b2.reshape(1),
        tbs=tbs, grid_len=grid_len, vmem_limit=vmem_limit, out_dtype=x.dtype)
    return out.reshape(Bp, 1)[:B]


def init_params(key):
    # PyTorch nn.Linear default init: U(-1/sqrt(fan_in), 1/sqrt(fan_in)).
    k1, k2, k3, k4 = jax.random.split(key, 4)
    bound1 = 1.0 / jnp.sqrt(6.0)
    bound2 = 1.0 / jnp.sqrt(12.0)
    w1 = jax.random.uniform(k1, (12, 6), jnp.float32, -bound1, bound1)  # fc1.weight
    b1 = jax.random.uniform(k2, (12,), jnp.float32, -bound1, bound1)    # fc1.bias
    w2 = jax.random.uniform(k3, (1, 12), jnp.float32, -bound2, bound2)  # fc2.weight
    b2 = jax.random.uniform(k4, (1,), jnp.float32, -bound2, bound2)     # fc2.bias
    return w1, b1, w2, b2


if __name__ == "__main__":
    key = jax.random.PRNGKey(0)
    kx, kp = jax.random.split(key)
    B = 8
    x = jax.random.normal(kx, (B, 6), jnp.float32)
    w1, b1, w2, b2 = init_params(kp)

    out = jax.block_until_ready(net_forward(x, w1, b1, w2, b2))

    # Reference in plain JAX (PyTorch convention: x @ W.T + b).
    ref = jnp.maximum(x @ w1.T + b1, 0.0) @ w2.T + b2
    assert out.shape == (B, 1)
    assert jnp.allclose(out, ref, atol=1e-5, rtol=1e-5)

    print("KERNEL_OK")
</pallas_src>

<mosaic_0001>
module attributes {stable_mosaic.version = 11 : i64} {
  func.func @_mlp_kernel(%arg0: i32, %arg1: memref<6x8x128xf32, #tpu.memory_space<vmem>>, %arg2: memref<12x6xf32, #tpu.memory_space<smem>>, %arg3: memref<12xf32, #tpu.memory_space<smem>>, %arg4: memref<12xf32, #tpu.memory_space<smem>>, %arg5: memref<1xf32, #tpu.memory_space<smem>>, %arg6: memref<8x128xf32, #tpu.memory_space<vmem>>) attributes {dimension_semantics = [#tpu.dimension_semantics<parallel>], iteration_bounds = array<i64: 1>, scalar_prefetch = 0 : i64, scratch_operands = 0 : i64, tpu.core_type = #tpu.core_type<tc>, window_params = [{transform_indices = @transform_0, window_bounds = array<i64: 6, 8, 128>}, {transform_indices = @transform_1, window_bounds = array<i64: 12, 6>}, {transform_indices = @transform_2, window_bounds = array<i64: 12>}, {transform_indices = @transform_3, window_bounds = array<i64: 12>}, {transform_indices = @transform_4, window_bounds = array<i64: 1>}, {transform_indices = @transform_5, window_bounds = array<i64: 8, 128>}]} {
    %c0 = arith.constant 0 : index
    %c0_0 = arith.constant 0 : index
    %0 = memref.load %arg2[%c0, %c0_0] : memref<12x6xf32, #tpu.memory_space<smem>>
    %c0_1 = arith.constant 0 : index
    %c1 = arith.constant 1 : index
    %1 = memref.load %arg2[%c0_1, %c1] : memref<12x6xf32, #tpu.memory_space<smem>>
    %c0_2 = arith.constant 0 : index
    %c2 = arith.constant 2 : index
    %2 = memref.load %arg2[%c0_2, %c2] : memref<12x6xf32, #tpu.memory_space<smem>>
    %c0_3 = arith.constant 0 : index
    %c3 = arith.constant 3 : index
    %3 = memref.load %arg2[%c0_3, %c3] : memref<12x6xf32, #tpu.memory_space<smem>>
    %c0_4 = arith.constant 0 : index
    %c4 = arith.constant 4 : index
    %4 = memref.load %arg2[%c0_4, %c4] : memref<12x6xf32, #tpu.memory_space<smem>>
    %c0_5 = arith.constant 0 : index
    %c5 = arith.constant 5 : index
    %5 = memref.load %arg2[%c0_5, %c5] : memref<12x6xf32, #tpu.memory_space<smem>>
    %c1_6 = arith.constant 1 : index
    %c0_7 = arith.constant 0 : index
    %6 = memref.load %arg2[%c1_6, %c0_7] : memref<12x6xf32, #tpu.memory_space<smem>>
    %c1_8 = arith.constant 1 : index
    %c1_9 = arith.constant 1 : index
    %7 = memref.load %arg2[%c1_8, %c1_9] : memref<12x6xf32, #tpu.memory_space<smem>>
    %c1_10 = arith.constant 1 : index
    %c2_11 = arith.constant 2 : index
    %8 = memref.load %arg2[%c1_10, %c2_11] : memref<12x6xf32, #tpu.memory_space<smem>>
    %c1_12 = arith.constant 1 : index
    %c3_13 = arith.constant 3 : index
    %9 = memref.load %arg2[%c1_12, %c3_13] : memref<12x6xf32, #tpu.memory_space<smem>>
    %c1_14 = arith.constant 1 : index
    %c4_15 = arith.constant 4 : index
    %10 = memref.load %arg2[%c1_14, %c4_15] : memref<12x6xf32, #tpu.memory_space<smem>>
    %c1_16 = arith.constant 1 : index
    %c5_17 = arith.constant 5 : index
    %11 = memref.load %arg2[%c1_16, %c5_17] : memref<12x6xf32, #tpu.memory_space<smem>>
    %c2_18 = arith.constant 2 : index
    %c0_19 = arith.constant 0 : index
    %12 = memref.load %arg2[%c2_18, %c0_19] : memref<12x6xf32, #tpu.memory_space<smem>>
    %c2_20 = arith.constant 2 : index
    %c1_21 = arith.constant 1 : index
    %13 = memref.load %arg2[%c2_20, %c1_21] : memref<12x6xf32, #tpu.memory_space<smem>>
    %c2_22 = arith.constant 2 : index
    %c2_23 = arith.constant 2 : index
    %14 = memref.load %arg2[%c2_22, %c2_23] : memref<12x6xf32, #tpu.memory_space<smem>>
    %c2_24 = arith.constant 2 : index
    %c3_25 = arith.constant 3 : index
    %15 = memref.load %arg2[%c2_24, %c3_25] : memref<12x6xf32, #tpu.memory_space<smem>>
    %c2_26 = arith.constant 2 : index
    %c4_27 = arith.constant 4 : index
    %16 = memref.load %arg2[%c2_26, %c4_27] : memref<12x6xf32, #tpu.memory_space<smem>>
    %c2_28 = arith.constant 2 : index
    %c5_29 = arith.constant 5 : index
    %17 = memref.load %arg2[%c2_28, %c5_29] : memref<12x6xf32, #tpu.memory_space<smem>>
    %c3_30 = arith.constant 3 : index
    %c0_31 = arith.constant 0 : index
    %18 = memref.load %arg2[%c3_30, %c0_31] : memref<12x6xf32, #tpu.memory_space<smem>>
    %c3_32 = arith.constant 3 : index
    %c1_33 = arith.constant 1 : index
    %19 = memref.load %arg2[%c3_32, %c1_33] : memref<12x6xf32, #tpu.memory_space<smem>>
    %c3_34 = arith.constant 3 : index
    %c2_35 = arith.constant 2 : index
    %20 = memref.load %arg2[%c3_34, %c2_35] : memref<12x6xf32, #tpu.memory_space<smem>>
    %c3_36 = arith.constant 3 : index
    %c3_37 = arith.constant 3 : index
    %21 = memref.load %arg2[%c3_36, %c3_37] : memref<12x6xf32, #tpu.memory_space<smem>>
    %c3_38 = arith.constant 3 : index
    %c4_39 = arith.constant 4 : index
    %22 = memref.load %arg2[%c3_38, %c4_39] : memref<12x6xf32, #tpu.memory_space<smem>>
    %c3_40 = arith.constant 3 : index
    %c5_41 = arith.constant 5 : index
    %23 = memref.load %arg2[%c3_40, %c5_41] : memref<12x6xf32, #tpu.memory_space<smem>>
    %c4_42 = arith.constant 4 : index
    %c0_43 = arith.constant 0 : index
    %24 = memref.load %arg2[%c4_42, %c0_43] : memref<12x6xf32, #tpu.memory_space<smem>>
    %c4_44 = arith.constant 4 : index
    %c1_45 = arith.constant 1 : index
    %25 = memref.load %arg2[%c4_44, %c1_45] : memref<12x6xf32, #tpu.memory_space<smem>>
    %c4_46 = arith.constant 4 : index
    %c2_47 = arith.constant 2 : index
    %26 = memref.load %arg2[%c4_46, %c2_47] : memref<12x6xf32, #tpu.memory_space<smem>>
    %c4_48 = arith.constant 4 : index
    %c3_49 = arith.constant 3 : index
    %27 = memref.load %arg2[%c4_48, %c3_49] : memref<12x6xf32, #tpu.memory_space<smem>>
    %c4_50 = arith.constant 4 : index
    %c4_51 = arith.constant 4 : index
    %28 = memref.load %arg2[%c4_50, %c4_51] : memref<12x6xf32, #tpu.memory_space<smem>>
    %c4_52 = arith.constant 4 : index
    %c5_53 = arith.constant 5 : index
    %29 = memref.load %arg2[%c4_52, %c5_53] : memref<12x6xf32, #tpu.memory_space<smem>>
    %c5_54 = arith.constant 5 : index
    %c0_55 = arith.constant 0 : index
    %30 = memref.load %arg2[%c5_54, %c0_55] : memref<12x6xf32, #tpu.memory_space<smem>>
    %c5_56 = arith.constant 5 : index
    %c1_57 = arith.constant 1 : index
    %31 = memref.load %arg2[%c5_56, %c1_57] : memref<12x6xf32, #tpu.memory_space<smem>>
    %c5_58 = arith.constant 5 : index
    %c2_59 = arith.constant 2 : index
    %32 = memref.load %arg2[%c5_58, %c2_59] : memref<12x6xf32, #tpu.memory_space<smem>>
    %c5_60 = arith.constant 5 : index
    %c3_61 = arith.constant 3 : index
    %33 = memref.load %arg2[%c5_60, %c3_61] : memref<12x6xf32, #tpu.memory_space<smem>>
    %c5_62 = arith.constant 5 : index
    %c4_63 = arith.constant 4 : index
    %34 = memref.load %arg2[%c5_62, %c4_63] : memref<12x6xf32, #tpu.memory_space<smem>>
    %c5_64 = arith.constant 5 : index
    %c5_65 = arith.constant 5 : index
    %35 = memref.load %arg2[%c5_64, %c5_65] : memref<12x6xf32, #tpu.memory_space<smem>>
    %c6 = arith.constant 6 : index
    %c0_66 = arith.constant 0 : index
    %36 = memref.load %arg2[%c6, %c0_66] : memref<12x6xf32, #tpu.memory_space<smem>>
    %c6_67 = arith.constant 6 : index
    %c1_68 = arith.constant 1 : index
    %37 = memref.load %arg2[%c6_67, %c1_68] : memref<12x6xf32, #tpu.memory_space<smem>>
    %c6_69 = arith.constant 6 : index
    %c2_70 = arith.constant 2 : index
    %38 = memref.load %arg2[%c6_69, %c2_70] : memref<12x6xf32, #tpu.memory_space<smem>>
    %c6_71 = arith.constant 6 : index
    %c3_72 = arith.constant 3 : index
    %39 = memref.load %arg2[%c6_71, %c3_72] : memref<12x6xf32, #tpu.memory_space<smem>>
    %c6_73 = arith.constant 6 : index
    %c4_74 = arith.constant 4 : index
    %40 = memref.load %arg2[%c6_73, %c4_74] : memref<12x6xf32, #tpu.memory_space<smem>>
    %c6_75 = arith.constant 6 : index
    %c5_76 = arith.constant 5 : index
    %41 = memref.load %arg2[%c6_75, %c5_76] : memref<12x6xf32, #tpu.memory_space<smem>>
    %c7 = arith.constant 7 : index
    %c0_77 = arith.constant 0 : index
    %42 = memref.load %arg2[%c7, %c0_77] : memref<12x6xf32, #tpu.memory_space<smem>>
    %c7_78 = arith.constant 7 : index
    %c1_79 = arith.constant 1 : index
    %43 = memref.load %arg2[%c7_78, %c1_79] : memref<12x6xf32, #tpu.memory_space<smem>>
    %c7_80 = arith.constant 7 : index
    %c2_81 = arith.constant 2 : index
    %44 = memref.load %arg2[%c7_80, %c2_81] : memref<12x6xf32, #tpu.memory_space<smem>>
    %c7_82 = arith.constant 7 : index
    %c3_83 = arith.constant 3 : index
    %45 = memref.load %arg2[%c7_82, %c3_83] : memref<12x6xf32, #tpu.memory_space<smem>>
    %c7_84 = arith.constant 7 : index
    %c4_85 = arith.constant 4 : index
    %46 = memref.load %arg2[%c7_84, %c4_85] : memref<12x6xf32, #tpu.memory_space<smem>>
    %c7_86 = arith.constant 7 : index
    %c5_87 = arith.constant 5 : index
    %47 = memref.load %arg2[%c7_86, %c5_87] : memref<12x6xf32, #tpu.memory_space<smem>>
    %c8 = arith.constant 8 : index
    %c0_88 = arith.constant 0 : index
    %48 = memref.load %arg2[%c8, %c0_88] : memref<12x6xf32, #tpu.memory_space<smem>>
    %c8_89 = arith.constant 8 : index
    %c1_90 = arith.constant 1 : index
    %49 = memref.load %arg2[%c8_89, %c1_90] : memref<12x6xf32, #tpu.memory_space<smem>>
    %c8_91 = arith.constant 8 : index
    %c2_92 = arith.constant 2 : index
    %50 = memref.load %arg2[%c8_91, %c2_92] : memref<12x6xf32, #tpu.memory_space<smem>>
    %c8_93 = arith.constant 8 : index
    %c3_94 = arith.constant 3 : index
    %51 = memref.load %arg2[%c8_93, %c3_94] : memref<12x6xf32, #tpu.memory_space<smem>>
    %c8_95 = arith.constant 8 : index
    %c4_96 = arith.constant 4 : index
    %52 = memref.load %arg2[%c8_95, %c4_96] : memref<12x6xf32, #tpu.memory_space<smem>>
    %c8_97 = arith.constant 8 : index
    %c5_98 = arith.constant 5 : index
    %53 = memref.load %arg2[%c8_97, %c5_98] : memref<12x6xf32, #tpu.memory_space<smem>>
    %c9 = arith.constant 9 : index
    %c0_99 = arith.constant 0 : index
    %54 = memref.load %arg2[%c9, %c0_99] : memref<12x6xf32, #tpu.memory_space<smem>>
    %c9_100 = arith.constant 9 : index
    %c1_101 = arith.constant 1 : index
    %55 = memref.load %arg2[%c9_100, %c1_101] : memref<12x6xf32, #tpu.memory_space<smem>>
    %c9_102 = arith.constant 9 : index
    %c2_103 = arith.constant 2 : index
    %56 = memref.load %arg2[%c9_102, %c2_103] : memref<12x6xf32, #tpu.memory_space<smem>>
    %c9_104 = arith.constant 9 : index
    %c3_105 = arith.constant 3 : index
    %57 = memref.load %arg2[%c9_104, %c3_105] : memref<12x6xf32, #tpu.memory_space<smem>>
    %c9_106 = arith.constant 9 : index
    %c4_107 = arith.constant 4 : index
    %58 = memref.load %arg2[%c9_106, %c4_107] : memref<12x6xf32, #tpu.memory_space<smem>>
    %c9_108 = arith.constant 9 : index
    %c5_109 = arith.constant 5 : index
    %59 = memref.load %arg2[%c9_108, %c5_109] : memref<12x6xf32, #tpu.memory_space<smem>>
    %c10 = arith.constant 10 : index
    %c0_110 = arith.constant 0 : index
    %60 = memref.load %arg2[%c10, %c0_110] : memref<12x6xf32, #tpu.memory_space<smem>>
    %c10_111 = arith.constant 10 : index
    %c1_112 = arith.constant 1 : index
    %61 = memref.load %arg2[%c10_111, %c1_112] : memref<12x6xf32, #tpu.memory_space<smem>>
    %c10_113 = arith.constant 10 : index
    %c2_114 = arith.constant 2 : index
    %62 = memref.load %arg2[%c10_113, %c2_114] : memref<12x6xf32, #tpu.memory_space<smem>>
    %c10_115 = arith.constant 10 : index
    %c3_116 = arith.constant 3 : index
    %63 = memref.load %arg2[%c10_115, %c3_116] : memref<12x6xf32, #tpu.memory_space<smem>>
    %c10_117 = arith.constant 10 : index
    %c4_118 = arith.constant 4 : index
    %64 = memref.load %arg2[%c10_117, %c4_118] : memref<12x6xf32, #tpu.memory_space<smem>>
    %c10_119 = arith.constant 10 : index
    %c5_120 = arith.constant 5 : index
    %65 = memref.load %arg2[%c10_119, %c5_120] : memref<12x6xf32, #tpu.memory_space<smem>>
    %c11 = arith.constant 11 : index
    %c0_121 = arith.constant 0 : index
    %66 = memref.load %arg2[%c11, %c0_121] : memref<12x6xf32, #tpu.memory_space<smem>>
    %c11_122 = arith.constant 11 : index
    %c1_123 = arith.constant 1 : index
    %67 = memref.load %arg2[%c11_122, %c1_123] : memref<12x6xf32, #tpu.memory_space<smem>>
    %c11_124 = arith.constant 11 : index
    %c2_125 = arith.constant 2 : index
    %68 = memref.load %arg2[%c11_124, %c2_125] : memref<12x6xf32, #tpu.memory_space<smem>>
    %c11_126 = arith.constant 11 : index
    %c3_127 = arith.constant 3 : index
    %69 = memref.load %arg2[%c11_126, %c3_127] : memref<12x6xf32, #tpu.memory_space<smem>>
    %c11_128 = arith.constant 11 : index
    %c4_129 = arith.constant 4 : index
    %70 = memref.load %arg2[%c11_128, %c4_129] : memref<12x6xf32, #tpu.memory_space<smem>>
    %c11_130 = arith.constant 11 : index
    %c5_131 = arith.constant 5 : index
    %71 = memref.load %arg2[%c11_130, %c5_131] : memref<12x6xf32, #tpu.memory_space<smem>>
    %c0_132 = arith.constant 0 : index
    %72 = memref.load %arg3[%c0_132] : memref<12xf32, #tpu.memory_space<smem>>
    %c1_133 = arith.constant 1 : index
    %73 = memref.load %arg3[%c1_133] : memref<12xf32, #tpu.memory_space<smem>>
    %c2_134 = arith.constant 2 : index
    %74 = memref.load %arg3[%c2_134] : memref<12xf32, #tpu.memory_space<smem>>
    %c3_135 = arith.constant 3 : index
    %75 = memref.load %arg3[%c3_135] : memref<12xf32, #tpu.memory_space<smem>>
    %c4_136 = arith.constant 4 : index
    %76 = memref.load %arg3[%c4_136] : memref<12xf32, #tpu.memory_space<smem>>
    %c5_137 = arith.constant 5 : index
    %77 = memref.load %arg3[%c5_137] : memref<12xf32, #tpu.memory_space<smem>>
    %c6_138 = arith.constant 6 : index
    %78 = memref.load %arg3[%c6_138] : memref<12xf32, #tpu.memory_space<smem>>
    %c7_139 = arith.constant 7 : index
    %79 = memref.load %arg3[%c7_139] : memref<12xf32, #tpu.memory_space<smem>>
    %c8_140 = arith.constant 8 : index
    %80 = memref.load %arg3[%c8_140] : memref<12xf32, #tpu.memory_space<smem>>
    %c9_141 = arith.constant 9 : index
    %81 = memref.load %arg3[%c9_141] : memref<12xf32, #tpu.memory_space<smem>>
    %c10_142 = arith.constant 10 : index
    %82 = memref.load %arg3[%c10_142] : memref<12xf32, #tpu.memory_space<smem>>
    %c11_143 = arith.constant 11 : index
    %83 = memref.load %arg3[%c11_143] : memref<12xf32, #tpu.memory_space<smem>>
    %c0_144 = arith.constant 0 : index
    %84 = memref.load %arg4[%c0_144] : memref<12xf32, #tpu.memory_space<smem>>
    %c1_145 = arith.constant 1 : index
    %85 = memref.load %arg4[%c1_145] : memref<12xf32, #tpu.memory_space<smem>>
    %c2_146 = arith.constant 2 : index
    %86 = memref.load %arg4[%c2_146] : memref<12xf32, #tpu.memory_space<smem>>
    %c3_147 = arith.constant 3 : index
    %87 = memref.load %arg4[%c3_147] : memref<12xf32, #tpu.memory_space<smem>>
    %c4_148 = arith.constant 4 : index
    %88 = memref.load %arg4[%c4_148] : memref<12xf32, #tpu.memory_space<smem>>
    %c5_149 = arith.constant 5 : index
    %89 = memref.load %arg4[%c5_149] : memref<12xf32, #tpu.memory_space<smem>>
    %c6_150 = arith.constant 6 : index
    %90 = memref.load %arg4[%c6_150] : memref<12xf32, #tpu.memory_space<smem>>
    %c7_151 = arith.constant 7 : index
    %91 = memref.load %arg4[%c7_151] : memref<12xf32, #tpu.memory_space<smem>>
    %c8_152 = arith.constant 8 : index
    %92 = memref.load %arg4[%c8_152] : memref<12xf32, #tpu.memory_space<smem>>
    %c9_153 = arith.constant 9 : index
    %93 = memref.load %arg4[%c9_153] : memref<12xf32, #tpu.memory_space<smem>>
    %c10_154 = arith.constant 10 : index
    %94 = memref.load %arg4[%c10_154] : memref<12xf32, #tpu.memory_space<smem>>
    %c11_155 = arith.constant 11 : index
    %95 = memref.load %arg4[%c11_155] : memref<12xf32, #tpu.memory_space<smem>>
    %c0_156 = arith.constant 0 : index
    %96 = memref.load %arg5[%c0_156] : memref<1xf32, #tpu.memory_space<smem>>
    %c0_i32 = arith.constant 0 : i32
    %c8_i32 = arith.constant 8 : i32
    %97 = arith.muli %c0_i32, %c8_i32 : i32
    %98 = tpu.assume_multiple %97, 8 : i32
    %c0_157 = arith.constant 0 : index
    %99 = arith.index_cast %98 : i32 to index
    %c0_158 = arith.constant 0 : index
    %100 = vector.load %arg1[%c0_157, %99, %c0_158] : memref<6x8x128xf32, #tpu.memory_space<vmem>>, vector<6x8x128xf32>
    %101 = vector.extract_strided_slice %100 {offsets = [0, 0, 0], sizes = [1, 8, 128], strides = [1, 1, 1]} : vector<6x8x128xf32> to vector<1x8x128xf32>
    %102 = vector.shape_cast %101 : vector<1x8x128xf32> to vector<8x128xf32>
    %103 = vector.extract_strided_slice %100 {offsets = [1, 0, 0], sizes = [1, 8, 128], strides = [1, 1, 1]} : vector<6x8x128xf32> to vector<1x8x128xf32>
    %104 = vector.shape_cast %103 : vector<1x8x128xf32> to vector<8x128xf32>
    %105 = vector.extract_strided_slice %100 {offsets = [2, 0, 0], sizes = [1, 8, 128], strides = [1, 1, 1]} : vector<6x8x128xf32> to vector<1x8x128xf32>
    %106 = vector.shape_cast %105 : vector<1x8x128xf32> to vector<8x128xf32>
    %107 = vector.extract_strided_slice %100 {offsets = [3, 0, 0], sizes = [1, 8, 128], strides = [1, 1, 1]} : vector<6x8x128xf32> to vector<1x8x128xf32>
    %108 = vector.shape_cast %107 : vector<1x8x128xf32> to vector<8x128xf32>
    %109 = vector.extract_strided_slice %100 {offsets = [4, 0, 0], sizes = [1, 8, 128], strides = [1, 1, 1]} : vector<6x8x128xf32> to vector<1x8x128xf32>
    %110 = vector.shape_cast %109 : vector<1x8x128xf32> to vector<8x128xf32>
    %111 = vector.extract_strided_slice %100 {offsets = [5, 0, 0], sizes = [1, 8, 128], strides = [1, 1, 1]} : vector<6x8x128xf32> to vector<1x8x128xf32>
    %112 = vector.shape_cast %111 : vector<1x8x128xf32> to vector<8x128xf32>
    %113 = vector.broadcast %96 : f32 to vector<8x128xf32>
    %114 = vector.broadcast %0 : f32 to vector<8x128xf32>
    %115 = arith.mulf %102, %114 : vector<8x128xf32>
    %116 = vector.broadcast %1 : f32 to vector<8x128xf32>
    %117 = arith.mulf %104, %116 : vector<8x128xf32>
    %118 = arith.addf %115, %117 : vector<8x128xf32>
    %119 = vector.broadcast %2 : f32 to vector<8x128xf32>
    %120 = arith.mulf %106, %119 : vector<8x128xf32>
    %121 = arith.addf %118, %120 : vector<8x128xf32>
    %122 = vector.broadcast %3 : f32 to vector<8x128xf32>
    %123 = arith.mulf %108, %122 : vector<8x128xf32>
    %124 = arith.addf %121, %123 : vector<8x128xf32>
    %125 = vector.broadcast %4 : f32 to vector<8x128xf32>
    %126 = arith.mulf %110, %125 : vector<8x128xf32>
    %127 = arith.addf %124, %126 : vector<8x128xf32>
    %128 = vector.broadcast %5 : f32 to vector<8x128xf32>
    %129 = arith.mulf %112, %128 : vector<8x128xf32>
    %130 = arith.addf %127, %129 : vector<8x128xf32>
    %131 = vector.broadcast %72 : f32 to vector<8x128xf32>
    %132 = arith.addf %130, %131 : vector<8x128xf32>
    %cst = arith.constant 0.000000e+00 : f32
    %133 = vector.broadcast %cst : f32 to vector<8x128xf32>
    %134 = arith.maximumf %132, %133 : vector<8x128xf32>
    %135 = vector.broadcast %84 : f32 to vector<8x128xf32>
    %136 = arith.mulf %134, %135 : vector<8x128xf32>
    %137 = arith.addf %113, %136 : vector<8x128xf32>
    %138 = vector.broadcast %6 : f32 to vector<8x128xf32>
    %139 = arith.mulf %102, %138 : vector<8x128xf32>
    %140 = vector.broadcast %7 : f32 to vector<8x128xf32>
    %141 = arith.mulf %104, %140 : vector<8x128xf32>
    %142 = arith.addf %139, %141 : vector<8x128xf32>
    %143 = vector.broadcast %8 : f32 to vector<8x128xf32>
    %144 = arith.mulf %106, %143 : vector<8x128xf32>
    %145 = arith.addf %142, %144 : vector<8x128xf32>
    %146 = vector.broadcast %9 : f32 to vector<8x128xf32>
    %147 = arith.mulf %108, %146 : vector<8x128xf32>
    %148 = arith.addf %145, %147 : vector<8x128xf32>
    %149 = vector.broadcast %10 : f32 to vector<8x128xf32>
    %150 = arith.mulf %110, %149 : vector<8x128xf32>
    %151 = arith.addf %148, %150 : vector<8x128xf32>
    %152 = vector.broadcast %11 : f32 to vector<8x128xf32>
    %153 = arith.mulf %112, %152 : vector<8x128xf32>
    %154 = arith.addf %151, %153 : vector<8x128xf32>
    %155 = vector.broadcast %73 : f32 to vector<8x128xf32>
    %156 = arith.addf %154, %155 : vector<8x128xf32>
    %cst_159 = arith.constant 0.000000e+00 : f32
    %157 = vector.broadcast %cst_159 : f32 to vector<8x128xf32>
    %158 = arith.maximumf %156, %157 : vector<8x128xf32>
    %159 = vector.broadcast %85 : f32 to vector<8x128xf32>
    %160 = arith.mulf %158, %159 : vector<8x128xf32>
    %161 = arith.addf %137, %160 : vector<8x128xf32>
    %162 = vector.broadcast %12 : f32 to vector<8x128xf32>
    %163 = arith.mulf %102, %162 : vector<8x128xf32>
    %164 = vector.broadcast %13 : f32 to vector<8x128xf32>
    %165 = arith.mulf %104, %164 : vector<8x128xf32>
    %166 = arith.addf %163, %165 : vector<8x128xf32>
    %167 = vector.broadcast %14 : f32 to vector<8x128xf32>
    %168 = arith.mulf %106, %167 : vector<8x128xf32>
    %169 = arith.addf %166, %168 : vector<8x128xf32>
    %170 = vector.broadcast %15 : f32 to vector<8x128xf32>
    %171 = arith.mulf %108, %170 : vector<8x128xf32>
    %172 = arith.addf %169, %171 : vector<8x128xf32>
    %173 = vector.broadcast %16 : f32 to vector<8x128xf32>
    %174 = arith.mulf %110, %173 : vector<8x128xf32>
    %175 = arith.addf %172, %174 : vector<8x128xf32>
    %176 = vector.broadcast %17 : f32 to vector<8x128xf32>
    %177 = arith.mulf %112, %176 : vector<8x128xf32>
    %178 = arith.addf %175, %177 : vector<8x128xf32>
    %179 = vector.broadcast %74 : f32 to vector<8x128xf32>
    %180 = arith.addf %178, %179 : vector<8x128xf32>
    %cst_160 = arith.constant 0.000000e+00 : f32
    %181 = vector.broadcast %cst_160 : f32 to vector<8x128xf32>
    %182 = arith.maximumf %180, %181 : vector<8x128xf32>
    %183 = vector.broadcast %86 : f32 to vector<8x128xf32>
    %184 = arith.mulf %182, %183 : vector<8x128xf32>
    %185 = arith.addf %161, %184 : vector<8x128xf32>
    %186 = vector.broadcast %18 : f32 to vector<8x128xf32>
    %187 = arith.mulf %102, %186 : vector<8x128xf32>
    %188 = vector.broadcast %19 : f32 to vector<8x128xf32>
    %189 = arith.mulf %104, %188 : vector<8x128xf32>
    %190 = arith.addf %187, %189 : vector<8x128xf32>
    %191 = vector.broadcast %20 : f32 to vector<8x128xf32>
    %192 = arith.mulf %106, %191 : vector<8x128xf32>
    %193 = arith.addf %190, %192 : vector<8x128xf32>
    %194 = vector.broadcast %21 : f32 to vector<8x128xf32>
    %195 = arith.mulf %108, %194 : vector<8x128xf32>
    %196 = arith.addf %193, %195 : vector<8x128xf32>
    %197 = vector.broadcast %22 : f32 to vector<8x128xf32>
    %198 = arith.mulf %110, %197 : vector<8x128xf32>
    %199 = arith.addf %196, %198 : vector<8x128xf32>
    %200 = vector.broadcast %23 : f32 to vector<8x128xf32>
    %201 = arith.mulf %112, %200 : vector<8x128xf32>
    %202 = arith.addf %199, %201 : vector<8x128xf32>
    %203 = vector.broadcast %75 : f32 to vector<8x128xf32>
    %204 = arith.addf %202, %203 : vector<8x128xf32>
    %cst_161 = arith.constant 0.000000e+00 : f32
    %205 = vector.broadcast %cst_161 : f32 to vector<8x128xf32>
    %206 = arith.maximumf %204, %205 : vector<8x128xf32>
    %207 = vector.broadcast %87 : f32 to vector<8x128xf32>
    %208 = arith.mulf %206, %207 : vector<8x128xf32>
    %209 = arith.addf %185, %208 : vector<8x128xf32>
    %210 = vector.broadcast %24 : f32 to vector<8x128xf32>
    %211 = arith.mulf %102, %210 : vector<8x128xf32>
    %212 = vector.broadcast %25 : f32 to vector<8x128xf32>
    %213 = arith.mulf %104, %212 : vector<8x128xf32>
    %214 = arith.addf %211, %213 : vector<8x128xf32>
    %215 = vector.broadcast %26 : f32 to vector<8x128xf32>
    %216 = arith.mulf %106, %215 : vector<8x128xf32>
    %217 = arith.addf %214, %216 : vector<8x128xf32>
    %218 = vector.broadcast %27 : f32 to vector<8x128xf32>
    %219 = arith.mulf %108, %218 : vector<8x128xf32>
    %220 = arith.addf %217, %219 : vector<8x128xf32>
    %221 = vector.broadcast %28 : f32 to vector<8x128xf32>
    %222 = arith.mulf %110, %221 : vector<8x128xf32>
    %223 = arith.addf %220, %222 : vector<8x128xf32>
    %224 = vector.broadcast %29 : f32 to vector<8x128xf32>
    %225 = arith.mulf %112, %224 : vector<8x128xf32>
    %226 = arith.addf %223, %225 : vector<8x128xf32>
    %227 = vector.broadcast %76 : f32 to vector<8x128xf32>
    %228 = arith.addf %226, %227 : vector<8x128xf32>
    %cst_162 = arith.constant 0.000000e+00 : f32
    %229 = vector.broadcast %cst_162 : f32 to vector<8x128xf32>
    %230 = arith.maximumf %228, %229 : vector<8x128xf32>
    %231 = vector.broadcast %88 : f32 to vector<8x128xf32>
    %232 = arith.mulf %230, %231 : vector<8x128xf32>
    %233 = arith.addf %209, %232 : vector<8x128xf32>
    %234 = vector.broadcast %30 : f32 to vector<8x128xf32>
    %235 = arith.mulf %102, %234 : vector<8x128xf32>
    %236 = vector.broadcast %31 : f32 to vector<8x128xf32>
    %237 = arith.mulf %104, %236 : vector<8x128xf32>
    %238 = arith.addf %235, %237 : vector<8x128xf32>
    %239 = vector.broadcast %32 : f32 to vector<8x128xf32>
    %240 = arith.mulf %106, %239 : vector<8x128xf32>
    %241 = arith.addf %238, %240 : vector<8x128xf32>
    %242 = vector.broadcast %33 : f32 to vector<8x128xf32>
    %243 = arith.mulf %108, %242 : vector<8x128xf32>
    %244 = arith.addf %241, %243 : vector<8x128xf32>
    %245 = vector.broadcast %34 : f32 to vector<8x128xf32>
    %246 = arith.mulf %110, %245 : vector<8x128xf32>
    %247 = arith.addf %244, %246 : vector<8x128xf32>
    %248 = vector.broadcast %35 : f32 to vector<8x128xf32>
    %249 = arith.mulf %112, %248 : vector<8x128xf32>
    %250 = arith.addf %247, %249 : vector<8x128xf32>
    %251 = vector.broadcast %77 : f32 to vector<8x128xf32>
    %252 = arith.addf %250, %251 : vector<8x128xf32>
    %cst_163 = arith.constant 0.000000e+00 : f32
    %253 = vector.broadcast %cst_163 : f32 to vector<8x128xf32>
    %254 = arith.maximumf %252, %253 : vector<8x128xf32>
    %255 = vector.broadcast %89 : f32 to vector<8x128xf32>
    %256 = arith.mulf %254, %255 : vector<8x128xf32>
    %257 = arith.addf %233, %256 : vector<8x128xf32>
    %258 = vector.broadcast %36 : f32 to vector<8x128xf32>
    %259 = arith.mulf %102, %258 : vector<8x128xf32>
    %260 = vector.broadcast %37 : f32 to vector<8x128xf32>
    %261 = arith.mulf %104, %260 : vector<8x128xf32>
    %262 = arith.addf %259, %261 : vector<8x128xf32>
    %263 = vector.broadcast %38 : f32 to vector<8x128xf32>
    %264 = arith.mulf %106, %263 : vector<8x128xf32>
    %265 = arith.addf %262, %264 : vector<8x128xf32>
    %266 = vector.broadcast %39 : f32 to vector<8x128xf32>
    %267 = arith.mulf %108, %266 : vector<8x128xf32>
    %268 = arith.addf %265, %267 : vector<8x128xf32>
    %269 = vector.broadcast %40 : f32 to vector<8x128xf32>
    %270 = arith.mulf %110, %269 : vector<8x128xf32>
    %271 = arith.addf %268, %270 : vector<8x128xf32>
    %272 = vector.broadcast %41 : f32 to vector<8x128xf32>
    %273 = arith.mulf %112, %272 : vector<8x128xf32>
    %274 = arith.addf %271, %273 : vector<8x128xf32>
    %275 = vector.broadcast %78 : f32 to vector<8x128xf32>
    %276 = arith.addf %274, %275 : vector<8x128xf32>
    %cst_164 = arith.constant 0.000000e+00 : f32
    %277 = vector.broadcast %cst_164 : f32 to vector<8x128xf32>
    %278 = arith.maximumf %276, %277 : vector<8x128xf32>
    %279 = vector.broadcast %90 : f32 to vector<8x128xf32>
    %280 = arith.mulf %278, %279 : vector<8x128xf32>
    %281 = arith.addf %257, %280 : vector<8x128xf32>
    %282 = vector.broadcast %42 : f32 to vector<8x128xf32>
    %283 = arith.mulf %102, %282 : vector<8x128xf32>
    %284 = vector.broadcast %43 : f32 to vector<8x128xf32>
    %285 = arith.mulf %104, %284 : vector<8x128xf32>
    %286 = arith.addf %283, %285 : vector<8x128xf32>
    %287 = vector.broadcast %44 : f32 to vector<8x128xf32>
    %288 = arith.mulf %106, %287 : vector<8x128xf32>
    %289 = arith.addf %286, %288 : vector<8x128xf32>
    %290 = vector.broadcast %45 : f32 to vector<8x128xf32>
    %291 = arith.mulf %108, %290 : vector<8x128xf32>
    %292 = arith.addf %289, %291 : vector<8x128xf32>
    %293 = vector.broadcast %46 : f32 to vector<8x128xf32>
    %294 = arith.mulf %110, %293 : vector<8x128xf32>
    %295 = arith.addf %292, %294 : vector<8x128xf32>
    %296 = vector.broadcast %47 : f32 to vector<8x128xf32>
    %297 = arith.mulf %112, %296 : vector<8x128xf32>
    %298 = arith.addf %295, %297 : vector<8x128xf32>
    %299 = vector.broadcast %79 : f32 to vector<8x128xf32>
    %300 = arith.addf %298, %299 : vector<8x128xf32>
    %cst_165 = arith.constant 0.000000e+00 : f32
    %301 = vector.broadcast %cst_165 : f32 to vector<8x128xf32>
    %302 = arith.maximumf %300, %301 : vector<8x128xf32>
    %303 = vector.broadcast %91 : f32 to vector<8x128xf32>
    %304 = arith.mulf %302, %303 : vector<8x128xf32>
    %305 = arith.addf %281, %304 : vector<8x128xf32>
    %306 = vector.broadcast %48 : f32 to vector<8x128xf32>
    %307 = arith.mulf %102, %306 : vector<8x128xf32>
    %308 = vector.broadcast %49 : f32 to vector<8x128xf32>
    %309 = arith.mulf %104, %308 : vector<8x128xf32>
    %310 = arith.addf %307, %309 : vector<8x128xf32>
    %311 = vector.broadcast %50 : f32 to vector<8x128xf32>
    %312 = arith.mulf %106, %311 : vector<8x128xf32>
    %313 = arith.addf %310, %312 : vector<8x128xf32>
    %314 = vector.broadcast %51 : f32 to vector<8x128xf32>
    %315 = arith.mulf %108, %314 : vector<8x128xf32>
    %316 = arith.addf %313, %315 : vector<8x128xf32>
    %317 = vector.broadcast %52 : f32 to vector<8x128xf32>
    %318 = arith.mulf %110, %317 : vector<8x128xf32>
    %319 = arith.addf %316, %318 : vector<8x128xf32>
    %320 = vector.broadcast %53 : f32 to vector<8x128xf32>
    %321 = arith.mulf %112, %320 : vector<8x128xf32>
    %322 = arith.addf %319, %321 : vector<8x128xf32>
    %323 = vector.broadcast %80 : f32 to vector<8x128xf32>
    %324 = arith.addf %322, %323 : vector<8x128xf32>
    %cst_166 = arith.constant 0.000000e+00 : f32
    %325 = vector.broadcast %cst_166 : f32 to vector<8x128xf32>
    %326 = arith.maximumf %324, %325 : vector<8x128xf32>
    %327 = vector.broadcast %92 : f32 to vector<8x128xf32>
    %328 = arith.mulf %326, %327 : vector<8x128xf32>
    %329 = arith.addf %305, %328 : vector<8x128xf32>
    %330 = vector.broadcast %54 : f32 to vector<8x128xf32>
    %331 = arith.mulf %102, %330 : vector<8x128xf32>
    %332 = vector.broadcast %55 : f32 to vector<8x128xf32>
    %333 = arith.mulf %104, %332 : vector<8x128xf32>
    %334 = arith.addf %331, %333 : vector<8x128xf32>
    %335 = vector.broadcast %56 : f32 to vector<8x128xf32>
    %336 = arith.mulf %106, %335 : vector<8x128xf32>
    %337 = arith.addf %334, %336 : vector<8x128xf32>
    %338 = vector.broadcast %57 : f32 to vector<8x128xf32>
    %339 = arith.mulf %108, %338 : vector<8x128xf32>
    %340 = arith.addf %337, %339 : vector<8x128xf32>
    %341 = vector.broadcast %58 : f32 to vector<8x128xf32>
    %342 = arith.mulf %110, %341 : vector<8x128xf32>
    %343 = arith.addf %340, %342 : vector<8x128xf32>
    %344 = vector.broadcast %59 : f32 to vector<8x128xf32>
    %345 = arith.mulf %112, %344 : vector<8x128xf32>
    %346 = arith.addf %343, %345 : vector<8x128xf32>
    %347 = vector.broadcast %81 : f32 to vector<8x128xf32>
    %348 = arith.addf %346, %347 : vector<8x128xf32>
    %cst_167 = arith.constant 0.000000e+00 : f32
    %349 = vector.broadcast %cst_167 : f32 to vector<8x128xf32>
    %350 = arith.maximumf %348, %349 : vector<8x128xf32>
    %351 = vector.broadcast %93 : f32 to vector<8x128xf32>
    %352 = arith.mulf %350, %351 : vector<8x128xf32>
    %353 = arith.addf %329, %352 : vector<8x128xf32>
    %354 = vector.broadcast %60 : f32 to vector<8x128xf32>
    %355 = arith.mulf %102, %354 : vector<8x128xf32>
    %356 = vector.broadcast %61 : f32 to vector<8x128xf32>
    %357 = arith.mulf %104, %356 : vector<8x128xf32>
    %358 = arith.addf %355, %357 : vector<8x128xf32>
    %359 = vector.broadcast %62 : f32 to vector<8x128xf32>
    %360 = arith.mulf %106, %359 : vector<8x128xf32>
    %361 = arith.addf %358, %360 : vector<8x128xf32>
    %362 = vector.broadcast %63 : f32 to vector<8x128xf32>
    %363 = arith.mulf %108, %362 : vector<8x128xf32>
    %364 = arith.addf %361, %363 : vector<8x128xf32>
    %365 = vector.broadcast %64 : f32 to vector<8x128xf32>
    %366 = arith.mulf %110, %365 : vector<8x128xf32>
    %367 = arith.addf %364, %366 : vector<8x128xf32>
    %368 = vector.broadcast %65 : f32 to vector<8x128xf32>
    %369 = arith.mulf %112, %368 : vector<8x128xf32>
    %370 = arith.addf %367, %369 : vector<8x128xf32>
    %371 = vector.broadcast %82 : f32 to vector<8x128xf32>
    %372 = arith.addf %370, %371 : vector<8x128xf32>
    %cst_168 = arith.constant 0.000000e+00 : f32
    %373 = vector.broadcast %cst_168 : f32 to vector<8x128xf32>
    %374 = arith.maximumf %372, %373 : vector<8x128xf32>
    %375 = vector.broadcast %94 : f32 to vector<8x128xf32>
    %376 = arith.mulf %374, %375 : vector<8x128xf32>
    %377 = arith.addf %353, %376 : vector<8x128xf32>
    %378 = vector.broadcast %66 : f32 to vector<8x128xf32>
    %379 = arith.mulf %102, %378 : vector<8x128xf32>
    %380 = vector.broadcast %67 : f32 to vector<8x128xf32>
    %381 = arith.mulf %104, %380 : vector<8x128xf32>
    %382 = arith.addf %379, %381 : vector<8x128xf32>
    %383 = vector.broadcast %68 : f32 to vector<8x128xf32>
    %384 = arith.mulf %106, %383 : vector<8x128xf32>
    %385 = arith.addf %382, %384 : vector<8x128xf32>
    %386 = vector.broadcast %69 : f32 to vector<8x128xf32>
    %387 = arith.mulf %108, %386 : vector<8x128xf32>
    %388 = arith.addf %385, %387 : vector<8x128xf32>
    %389 = vector.broadcast %70 : f32 to vector<8x128xf32>
    %390 = arith.mulf %110, %389 : vector<8x128xf32>
    %391 = arith.addf %388, %390 : vector<8x128xf32>
    %392 = vector.broadcast %71 : f32 to vector<8x128xf32>
    %393 = arith.mulf %112, %392 : vector<8x128xf32>
    %394 = arith.addf %391, %393 : vector<8x128xf32>
    %395 = vector.broadcast %83 : f32 to vector<8x128xf32>
    %396 = arith.addf %394, %395 : vector<8x128xf32>
    %cst_169 = arith.constant 0.000000e+00 : f32
    %397 = vector.broadcast %cst_169 : f32 to vector<8x128xf32>
    %398 = arith.maximumf %396, %397 : vector<8x128xf32>
    %399 = vector.broadcast %95 : f32 to vector<8x128xf32>
    %400 = arith.mulf %398, %399 : vector<8x128xf32>
    %401 = arith.addf %377, %400 : vector<8x128xf32>
    %402 = arith.index_cast %98 : i32 to index
    %c0_170 = arith.constant 0 : index
    %403 = vector.load %arg6[%402, %c0_170] : memref<8x128xf32, #tpu.memory_space<vmem>>, vector<8x128xf32>
    tpu.vector_store %arg6[%402, %c0_170], %401 {strides = array<i32>} : memref<8x128xf32, #tpu.memory_space<vmem>>, vector<8x128xf32>,
    %c1_i32 = arith.constant 1 : i32
    return
  }
  func.func @transform_0(%arg0: i32) -> (i32, i32, i32) {
    %c0_i32 = arith.constant 0 : i32
    %c0_i32_0 = arith.constant 0 : i32
    %c0_i32_1 = arith.constant 0 : i32
    return %c0_i32, %arg0, %c0_i32_0 : i32, i32, i32
  }
  func.func @transform_1(%arg0: i32) -> (i32, i32) {
    %c0_i32 = arith.constant 0 : i32
    %c0_i32_0 = arith.constant 0 : i32
    %c0_i32_1 = arith.constant 0 : i32
    return %c0_i32, %c0_i32_0 : i32, i32
  }
  func.func @transform_2(%arg0: i32) -> i32 {
    %c0_i32 = arith.constant 0 : i32
    %c0_i32_0 = arith.constant 0 : i32
    return %c0_i32 : i32
  }
  func.func @transform_3(%arg0: i32) -> i32 {
    %c0_i32 = arith.constant 0 : i32
    %c0_i32_0 = arith.constant 0 : i32
    return %c0_i32 : i32
  }
  func.func @transform_4(%arg0: i32) -> i32 {
    %c0_i32 = arith.constant 0 : i32
    %c0_i32_0 = arith.constant 0 : i32
    return %c0_i32 : i32
  }
  func.func @transform_5(%arg0: i32) -> (i32, i32) {
    %c0_i32 = arith.constant 0 : i32
    %c0_i32_0 = arith.constant 0 : i32
    return %arg0, %c0_i32 : i32, i32
  }
}

</mosaic_0001>

<llo_original>
// kernel: net_forward.1
$region0: #{net_forward.1}
  #allocation0 [shape = 'u32[]', space=smem, size = 0x4, offset = 0x4, fixed_abs, tag = 'smem constant byte address 0x4 - core index']
  #allocation1 [shape = 'u32[72,128]{1,0:T(1,128)}', space=vmem, size = 0x9000, scoped, tag = 'internal scratch']
  #allocation2 [shape = 'f32[1]{0:T(128)S(6)}', space=smem, size = 0x200, scoped, tag = 'scoped memory for net_forward.1']
  %s0 = inlined_call_operand.vmem [shape: f32[6,8,128], index: 0, kind: input, shape index: {}]
  %s1 = inlined_call_operand.vmem [shape: f32[12,6], index: 1, kind: input, shape index: {}]
  %s2 = inlined_call_operand.vmem [shape: f32[12], index: 2, kind: input, shape index: {}]
  %s3 = inlined_call_operand.vmem [shape: f32[12], index: 3, kind: input, shape index: {}]
  %s4 = inlined_call_operand.<no memory space> [shape: f32[1], index: 4, kind: input, shape index: {}]
  %s5 = inlined_call_operand.vmem [shape: f32[8,128], index: 5, kind: output, shape index: {}]
  %s6 = sld [smem:[#allocation0]]
  $region42: #{net_forward.1} parent=0
    _
  %s8 = ssub.s32 1, %s6
  %s9 = scalar_select 0, %s8, %s6
  %10 = sst [smem:[#allocation2]] %s4
  $region1: #{net_forward.1} parent=0
    #allocation3 [shape = 'u8[8192]{0}', space=smem, size = 0x2000, scoped, tag = 'input window, operand 1, single buffered']
    #allocation4 [shape = 's32[1]{0}', space=sflag, size = 0x4, scoped, tag = 'scoped memory for net_forward.1']
    #allocation5 [shape = 'u8[512]{0}', space=smem, size = 0x200, scoped, tag = 'input window, operand 2, single buffered']
    #allocation6 [shape = 's32[1]{0}', space=sflag, size = 0x4, scoped, tag = 'scoped memory for net_forward.1']
    #allocation7 [shape = 'u8[512]{0}', space=smem, size = 0x200, scoped, tag = 'input window, operand 3, single buffered']
    %11 = vsyncpa [#allocation4], 0
    %12 = vsyncpa [#allocation6], 0
    // Predicated region
    $region2: #{net_forward.1} parent=1 // pred_check
      _
    $region3: #{net_forward.1} parent=1 // pred_check_branch
      %14 = sbr.rel (0) target = $region5
    $region4: #{net_forward.1} parent=1 // pred_region
      _
    $region5: #{net_forward.1} parent=1 // pred_fallthru
      _
    // Predicated region
    $region6: #{net_forward.1} parent=1 // pred_check
      _
    $region7: #{net_forward.1} parent=1 // pred_check_branch
      %16 = sbr.rel (0) target = $region9
    $region8: #{net_forward.1} parent=1 // pred_region
      %18 = vsyncadd [#allocation4], 0
      %s19 = sshll.u32 %s1, 4
      %s20 = int_to_ptr.vmem [resolvable:$true] %s19
      %25 = dma.vmem_to_smem %s20, 256, [#allocation3], [#allocation4], 128, 128, 8
    $region9: #{net_forward.1} parent=1 // pred_fallthru
      _
    // Predicated region
    $region10: #{net_forward.1} parent=1 // pred_check
      _
    $region11: #{net_forward.1} parent=1 // pred_check_branch
      %27 = sbr.rel (0) target = $region13
    $region12: #{net_forward.1} parent=1 // pred_region
      %29 = vsyncadd [#allocation6], 0
      %s31 = sshll.u32 %s2, 4
      %s32 = int_to_ptr.vmem [resolvable:$true] %s31
      %34 = dma.vmem_to_smem %s32, 16, [#allocation5], [#allocation6]
    $region13: #{net_forward.1} parent=1 // pred_fallthru
      _
    // Predicated region
    $region14: #{net_forward.1} parent=1 // pred_check
      _
    $region15: #{net_forward.1} parent=1 // pred_check_branch
      %36 = sbr.rel (0) target = $region17
    $region16: #{net_forward.1} parent=1 // pred_region
      %38 = vsyncadd [#allocation6], 0
      %s40 = sshll.u32 %s3, 4
      %s41 = int_to_ptr.vmem [resolvable:$true] %s40
      %43 = dma.vmem_to_smem %s41, 16, [#allocation7], [#allocation6]
    $region17: #{net_forward.1} parent=1 // pred_fallthru
      _
    // Predicated region
    $region18: #{net_forward.1} parent=1 // pred_check
      _
    $region19: #{net_forward.1} parent=1 // pred_check_branch
      %45 = sbr.rel (0) target = $region21
    $region20: #{net_forward.1} parent=1 // pred_region
      _
    $region21: #{net_forward.1} parent=1 // pred_fallthru
      _
    // Predicated region
    $region22: #{net_forward.1} parent=1 // pred_check
      _
    $region23: #{net_forward.1} parent=1 // pred_check_branch
      %47 = sbr.rel (0) target = $region25
    $region24: #{net_forward.1} parent=1 // pred_region
      %49 = dma.done [#allocation4], 256
    $region25: #{net_forward.1} parent=1 // pred_fallthru
      _
    // Predicated region
    $region26: #{net_forward.1} parent=1 // pred_check
      _
    $region27: #{net_forward.1} parent=1 // pred_check_branch
      %51 = sbr.rel (0) target = $region29
    $region28: #{net_forward.1} parent=1 // pred_region
      %53 = dma.done [#allocation6], 16
    $region29: #{net_forward.1} parent=1 // pred_fallthru
      _
    // Predicated region
    $region30: #{net_forward.1} parent=1 // pred_check
      _
    $region31: #{net_forward.1} parent=1 // pred_check_branch
      %55 = sbr.rel (0) target = $region33
    $region32: #{net_forward.1} parent=1 // pred_region
      %57 = dma.done [#allocation6], 16
    $region33: #{net_forward.1} parent=1 // pred_fallthru
      _
    %58 = sfence
    %s59 = sld [smem:[#allocation3]]
    %s60 = sld [smem:[#allocation3 + $0x1]]
    %s61 = sld [smem:[#allocation3 + $0x2]]
    %s62 = sld [smem:[#allocation3 + $0x3]]
    %s63 = sld [smem:[#allocation3 + $0x4]]
    %s64 = sld [smem:[#allocation3 + $0x5]]
    %s65 = sld [smem:[#allocation3 + $0x80]]
    %s66 = sld [smem:[#allocation3 + $0x81]]
    %s67 = sld [smem:[#allocation3 + $0x82]]
    %s68 = sld [smem:[#allocation3 + $0x83]]
    %s69 = sld [smem:[#allocation3 + $0x84]]
    %s70 = sld [smem:[#allocation3 + $0x85]]
    %s71 = sld [smem:[#allocation3 + $0x100]]
    %s72 = sld [smem:[#allocation3 + $0x101]]
    %s73 = sld [smem:[#allocation3 + $0x102]]
    %s74 = sld [smem:[#allocation3 + $0x103]]
    %s75 = sld [smem:[#allocation3 + $0x104]]
    %s76 = sld [smem:[#allocation3 + $0x105]]
    %s77 = sld [smem:[#allocation3 + $0x180]]
    %s78 = sld [smem:[#allocation3 + $0x181]]
    %s79 = sld [smem:[#allocation3 + $0x182]]
    %s80 = sld [smem:[#allocation3 + $0x183]]
    %s81 = sld [smem:[#allocation3 + $0x184]]
    %s82 = sld [smem:[#allocation3 + $0x185]]
    %s83 = sld [smem:[#allocation3 + $0x200]]
    %s84 = sld [smem:[#allocation3 + $0x201]]
    %s85 = sld [smem:[#allocation3 + $0x202]]
    %s86 = sld [smem:[#allocation3 + $0x203]]
    %s87 = sld [smem:[#allocation3 + $0x204]]
    %s88 = sld [smem:[#allocation3 + $0x205]]
    %s89 = sld [smem:[#allocation3 + $0x280]]
    %s90 = sld [smem:[#allocation3 + $0x281]]
    %s91 = sld [smem:[#allocation3 + $0x282]]
    %s92 = sld [smem:[#allocation3 + $0x283]]
    %s93 = sld [smem:[#allocation3 + $0x284]]
    %s94 = sld [smem:[#allocation3 + $0x285]]
    %s95 = sld [smem:[#allocation3 + $0x300]]
    %s96 = sld [smem:[#allocation3 + $0x301]]
    %s97 = sld [smem:[#allocation3 + $0x302]]
    %s98 = sld [smem:[#allocation3 + $0x303]]
    %s99 = sld [smem:[#allocation3 + $0x304]]
    %s100 = sld [smem:[#allocation3 + $0x305]]
    %s101 = sld [smem:[#allocation3 + $0x380]]
    %s102 = sld [smem:[#allocation3 + $0x381]]
    %s103 = sld [smem:[#allocation3 + $0x382]]
    %s104 = sld [smem:[#allocation3 + $0x383]]
    %s105 = sld [smem:[#allocation3 + $0x384]]
    %s106 = sld [smem:[#allocation3 + $0x385]]
    %s107 = sld [smem:[#allocation3 + $0x400]]
    %s108 = sld [smem:[#allocation3 + $0x401]]
    %s109 = sld [smem:[#allocation3 + $0x402]]
    %s110 = sld [smem:[#allocation3 + $0x403]]
    %s111 = sld [smem:[#allocation3 + $0x404]]
    %s112 = sld [smem:[#allocation3 + $0x405]]
    %s113 = sld [smem:[#allocation3 + $0x480]]
    %s114 = sld [smem:[#allocation3 + $0x481]]
    %s115 = sld [smem:[#allocation3 + $0x482]]
    %s116 = sld [smem:[#allocation3 + $0x483]]
    %s117 = sld [smem:[#allocation3 + $0x484]]
    %s118 = sld [smem:[#allocation3 + $0x485]]
    %s119 = sld [smem:[#allocation3 + $0x500]]
    %s120 = sld [smem:[#allocation3 + $0x501]]
    %s121 = sld [smem:[#allocation3 + $0x502]]
    %s122 = sld [smem:[#allocation3 + $0x503]]
    %s123 = sld [smem:[#allocation3 + $0x504]]
    %s124 = sld [smem:[#allocation3 + $0x505]]
    %s125 = sld [smem:[#allocation3 + $0x580]]
    %s126 = sld [smem:[#allocation3 + $0x581]]
    %s127 = sld [smem:[#allocation3 + $0x582]]
    %s128 = sld [smem:[#allocation3 + $0x583]]
    %s129 = sld [smem:[#allocation3 + $0x584]]
    %s130 = sld [smem:[#allocation3 + $0x585]]
    %s131 = sld [smem:[#allocation5]]
    %s132 = sld [smem:[#allocation5 + $0x1]]
    %s133 = sld [smem:[#allocation5 + $0x2]]
    %s134 = sld [smem:[#allocation5 + $0x3]]
    %s135 = sld [smem:[#allocation5 + $0x4]]
    %s136 = sld [smem:[#allocation5 + $0x5]]
    %s137 = sld [smem:[#allocation5 + $0x6]]
    %s138 = sld [smem:[#allocation5 + $0x7]]
    %s139 = sld [smem:[#allocation5 + $0x8]]
    %s140 = sld [smem:[#allocation5 + $0x9]]
    %s141 = sld [smem:[#allocation5 + $0xa]]
    %s142 = sld [smem:[#allocation5 + $0xb]]
    %s143 = sld [smem:[#allocation7]]
    %s144 = sld [smem:[#allocation7 + $0x1]]
    %s145 = sld [smem:[#allocation7 + $0x2]]
    %s146 = sld [smem:[#allocation7 + $0x3]]
    %s147 = sld [smem:[#allocation7 + $0x4]]
    %s148 = sld [smem:[#allocation7 + $0x5]]
    %s149 = sld [smem:[#allocation7 + $0x6]]
    %s150 = sld [smem:[#allocation7 + $0x7]]
    %s151 = sld [smem:[#allocation7 + $0x8]]
    %s152 = sld [smem:[#allocation7 + $0x9]]
    %s153 = sld [smem:[#allocation7 + $0xa]]
    %s154 = sld [smem:[#allocation7 + $0xb]]
    %s155 = sld [smem:[#allocation2]]
    %v156 = vld [vmem:[%s0] sm:$0xff]
    %v157 = vld [vmem:[%s0 + $0x8] sm:$0xff]
    %v158 = vld [vmem:[%s0 + $0x10] sm:$0xff]
    %v159 = vld [vmem:[%s0 + $0x18] sm:$0xff]
    %v160 = vld [vmem:[%s0 + $0x20] sm:$0xff]
    %v161 = vld [vmem:[%s0 + $0x28] sm:$0xff]
    %v162 = vstv %s155
    %v163 = vstv %s59
    %v164 = vmul.f32 %v156, %v163
    %v165 = vstv %s60
    %v166 = vmul.f32 %v157, %v165
    %v167 = vadd.f32 %v164, %v166
    %v168 = vstv %s61
    %v169 = vmul.f32 %v158, %v168
    %v170 = vadd.f32 %v167, %v169
    %v171 = vstv %s62
    %v172 = vmul.f32 %v159, %v171
    %v173 = vadd.f32 %v170, %v172
    %v174 = vstv %s63
    %v175 = vmul.f32 %v160, %v174
    %v176 = vadd.f32 %v173, %v175
    %v177 = vstv %s64
    %v178 = vmul.f32 %v161, %v177
    %v179 = vadd.f32 %v176, %v178
    %v180 = vstv %s131
    %v181 = vadd.f32 %v179, %v180
    %v182 = vmax.f32 %v181, 0.0
    %v183 = vstv %s143
    %v184 = vmul.f32 %v182, %v183
    %v185 = vadd.f32 %v162, %v184
    %v186 = vstv %s65
    %v187 = vmul.f32 %v156, %v186
    %v188 = vstv %s66
    %v189 = vmul.f32 %v157, %v188
    %v190 = vadd.f32 %v187, %v189
    %v191 = vstv %s67
    %v192 = vmul.f32 %v158, %v191
    %v193 = vadd.f32 %v190, %v192
    %v194 = vstv %s68
    %v195 = vmul.f32 %v159, %v194
    %v196 = vadd.f32 %v193, %v195
    %v197 = vstv %s69
    %v198 = vmul.f32 %v160, %v197
    %v199 = vadd.f32 %v196, %v198
    %v200 = vstv %s70
    %v201 = vmul.f32 %v161, %v200
    %v202 = vadd.f32 %v199, %v201
    %v203 = vstv %s132
    %v204 = vadd.f32 %v202, %v203
    %v205 = vmax.f32 %v204, 0.0
    %v206 = vstv %s144
    %v207 = vmul.f32 %v205, %v206
    %v208 = vadd.f32 %v185, %v207
    %v209 = vstv %s71
    %v210 = vmul.f32 %v156, %v209
    %v211 = vstv %s72
    %v212 = vmul.f32 %v157, %v211
    %v213 = vadd.f32 %v210, %v212
    %v214 = vstv %s73
    %v215 = vmul.f32 %v158, %v214
    %v216 = vadd.f32 %v213, %v215
    %v217 = vstv %s74
    %v218 = vmul.f32 %v159, %v217
    %v219 = vadd.f32 %v216, %v218
    %v220 = vstv %s75
    %v221 = vmul.f32 %v160, %v220
    %v222 = vadd.f32 %v219, %v221
    %v223 = vstv %s76
    %v224 = vmul.f32 %v161, %v223
    %v225 = vadd.f32 %v222, %v224
    %v226 = vstv %s133
    %v227 = vadd.f32 %v225, %v226
    %v228 = vmax.f32 %v227, 0.0
    %v229 = vstv %s145
    %v230 = vmul.f32 %v228, %v229
    %v231 = vadd.f32 %v208, %v230
    %v232 = vstv %s77
    %v233 = vmul.f32 %v156, %v232
    %v234 = vstv %s78
    %v235 = vmul.f32 %v157, %v234
    %v236 = vadd.f32 %v233, %v235
    %v237 = vstv %s79
    %v238 = vmul.f32 %v158, %v237
    %v239 = vadd.f32 %v236, %v238
    %v240 = vstv %s80
    %v241 = vmul.f32 %v159, %v240
    %v242 = vadd.f32 %v239, %v241
    %v243 = vstv %s81
    %v244 = vmul.f32 %v160, %v243
    %v245 = vadd.f32 %v242, %v244
    %v246 = vstv %s82
    %v247 = vmul.f32 %v161, %v246
    %v248 = vadd.f32 %v245, %v247
    %v249 = vstv %s134
    %v250 = vadd.f32 %v248, %v249
    %v251 = vmax.f32 %v250, 0.0
    %v252 = vstv %s146
    %v253 = vmul.f32 %v251, %v252
    %v254 = vadd.f32 %v231, %v253
    %v255 = vstv %s83
    %v256 = vmul.f32 %v156, %v255
    %v257 = vstv %s84
    %v258 = vmul.f32 %v157, %v257
    %v259 = vadd.f32 %v256, %v258
    %v260 = vstv %s85
    %v261 = vmul.f32 %v158, %v260
    %v262 = vadd.f32 %v259, %v261
    %v263 = vstv %s86
    %v264 = vmul.f32 %v159, %v263
    %v265 = vadd.f32 %v262, %v264
    %v266 = vstv %s87
    %v267 = vmul.f32 %v160, %v266
    %v268 = vadd.f32 %v265, %v267
    %v269 = vstv %s88
    %v270 = vmul.f32 %v161, %v269
    %v271 = vadd.f32 %v268, %v270
    %v272 = vstv %s135
    %v273 = vadd.f32 %v271, %v272
    %v274 = vmax.f32 %v273, 0.0
    %v275 = vstv %s147
    %v276 = vmul.f32 %v274, %v275
    %v277 = vadd.f32 %v254, %v276
    %v278 = vstv %s89
    %v279 = vmul.f32 %v156, %v278
    %v280 = vstv %s90
    %v281 = vmul.f32 %v157, %v280
    %v282 = vadd.f32 %v279, %v281
    %v283 = vstv %s91
    %v284 = vmul.f32 %v158, %v283
    %v285 = vadd.f32 %v282, %v284
    %v286 = vstv %s92
    %v287 = vmul.f32 %v159, %v286
    %v288 = vadd.f32 %v285, %v287
    %v289 = vstv %s93
    %v290 = vmul.f32 %v160, %v289
    %v291 = vadd.f32 %v288, %v290
    %v292 = vstv %s94
    %v293 = vmul.f32 %v161, %v292
    %v294 = vadd.f32 %v291, %v293
    %v295 = vstv %s136
    %v296 = vadd.f32 %v294, %v295
    %v297 = vmax.f32 %v296, 0.0
    %v298 = vstv %s148
    %v299 = vmul.f32 %v297, %v298
    %v300 = vadd.f32 %v277, %v299
    %v301 = vstv %s95
    %v302 = vmul.f32 %v156, %v301
    %v303 = vstv %s96
    %v304 = vmul.f32 %v157, %v303
    %v305 = vadd.f32 %v302, %v304
    %v306 = vstv %s97
    %v307 = vmul.f32 %v158, %v306
    %v308 = vadd.f32 %v305, %v307
    %v309 = vstv %s98
    %v310 = vmul.f32 %v159, %v309
    %v311 = vadd.f32 %v308, %v310
    %v312 = vstv %s99
    %v313 = vmul.f32 %v160, %v312
    %v314 = vadd.f32 %v311, %v313
    %v315 = vstv %s100
    %v316 = vmul.f32 %v161, %v315
    %v317 = vadd.f32 %v314, %v316
    %v318 = vstv %s137
    %v319 = vadd.f32 %v317, %v318
    %v320 = vmax.f32 %v319, 0.0
    %v321 = vstv %s149
    %v322 = vmul.f32 %v320, %v321
    %v323 = vadd.f32 %v300, %v322
    %v324 = vstv %s101
    %v325 = vmul.f32 %v156, %v324
    %v326 = vstv %s102
    %v327 = vmul.f32 %v157, %v326
    %v328 = vadd.f32 %v325, %v327
    %v329 = vstv %s103
    %v330 = vmul.f32 %v158, %v329
    %v331 = vadd.f32 %v328, %v330
    %v332 = vstv %s104
    %v333 = vmul.f32 %v159, %v332
    %v334 = vadd.f32 %v331, %v333
    %v335 = vstv %s105
    %v336 = vmul.f32 %v160, %v335
    %v337 = vadd.f32 %v334, %v336
    %v338 = vstv %s106
    %v339 = vmul.f32 %v161, %v338
    %v340 = vadd.f32 %v337, %v339
    %v341 = vstv %s138
    %v342 = vadd.f32 %v340, %v341
    %v343 = vmax.f32 %v342, 0.0
    %v344 = vstv %s150
    %v345 = vmul.f32 %v343, %v344
    %v346 = vadd.f32 %v323, %v345
    %v347 = vstv %s107
    %v348 = vmul.f32 %v156, %v347
    %v349 = vstv %s108
    %v350 = vmul.f32 %v157, %v349
    %v351 = vadd.f32 %v348, %v350
    %v352 = vstv %s109
    %v353 = vmul.f32 %v158, %v352
    %v354 = vadd.f32 %v351, %v353
    %v355 = vstv %s110
    %v356 = vmul.f32 %v159, %v355
    %v357 = vadd.f32 %v354, %v356
    %v358 = vstv %s111
    %v359 = vmul.f32 %v160, %v358
    %v360 = vadd.f32 %v357, %v359
    %v361 = vstv %s112
    %v362 = vmul.f32 %v161, %v361
    %v363 = vadd.f32 %v360, %v362
    %v364 = vstv %s139
    %v365 = vadd.f32 %v363, %v364
    %v366 = vmax.f32 %v365, 0.0
    %v367 = vstv %s151
    %v368 = vmul.f32 %v366, %v367
    %v369 = vadd.f32 %v346, %v368
    %v370 = vstv %s113
    %v371 = vmul.f32 %v156, %v370
    %v372 = vstv %s114
    %v373 = vmul.f32 %v157, %v372
    %v374 = vadd.f32 %v371, %v373
    %v375 = vstv %s115
    %v376 = vmul.f32 %v158, %v375
    %v377 = vadd.f32 %v374, %v376
    %v378 = vstv %s116
    %v379 = vmul.f32 %v159, %v378
    %v380 = vadd.f32 %v377, %v379
    %v381 = vstv %s117
    %v382 = vmul.f32 %v160, %v381
    %v383 = vadd.f32 %v380, %v382
    %v384 = vstv %s118
    %v385 = vmul.f32 %v161, %v384
    %v386 = vadd.f32 %v383, %v385
    %v387 = vstv %s140
    %v388 = vadd.f32 %v386, %v387
    %v389 = vmax.f32 %v388, 0.0
    %v390 = vstv %s152
    %v391 = vmul.f32 %v389, %v390
    %v392 = vadd.f32 %v369, %v391
    %v393 = vstv %s119
    %v394 = vmul.f32 %v156, %v393
    %v395 = vstv %s120
    %v396 = vmul.f32 %v157, %v395
    %v397 = vadd.f32 %v394, %v396
    %v398 = vstv %s121
    %v399 = vmul.f32 %v158, %v398
    %v400 = vadd.f32 %v397, %v399
    %v401 = vstv %s122
    %v402 = vmul.f32 %v159, %v401
    %v403 = vadd.f32 %v400, %v402
    %v404 = vstv %s123
    %v405 = vmul.f32 %v160, %v404
    %v406 = vadd.f32 %v403, %v405
    %v407 = vstv %s124
    %v408 = vmul.f32 %v161, %v407
    %v409 = vadd.f32 %v406, %v408
    %v410 = vstv %s141
    %v411 = vadd.f32 %v409, %v410
    %v412 = vmax.f32 %v411, 0.0
    %v413 = vstv %s153
    %v414 = vmul.f32 %v412, %v413
    %v415 = vadd.f32 %v392, %v414
    %v416 = vstv %s125
    %v417 = vmul.f32 %v156, %v416
    %v418 = vstv %s126
    %v419 = vmul.f32 %v157, %v418
    %v420 = vadd.f32 %v417, %v419
    %v421 = vstv %s127
    %v422 = vmul.f32 %v158, %v421
    %v423 = vadd.f32 %v420, %v422
    %v424 = vstv %s128
    %v425 = vmul.f32 %v159, %v424
    %v426 = vadd.f32 %v423, %v425
    %v427 = vstv %s129
    %v428 = vmul.f32 %v160, %v427
    %v429 = vadd.f32 %v426, %v428
    %v430 = vstv %s130
    %v431 = vmul.f32 %v161, %v430
    %v432 = vadd.f32 %v429, %v431
    %v433 = vstv %s142
    %v434 = vadd.f32 %v432, %v433
    %v435 = vmax.f32 %v434, 0.0
    %v436 = vstv %s154
    %v437 = vmul.f32 %v435, %v436
    %v438 = vadd.f32 %v415, %v437
    %439 = vst [vmem:[%s5] sm:$0xff] %v438
    // Predicated region
    $region34: #{net_forward.1} parent=1 // pred_check
      _
    $region35: #{net_forward.1} parent=1 // pred_check_branch
      %441 = sbr.rel (0) target = $region37
    $region36: #{net_forward.1} parent=1 // pred_region
      _
    $region37: #{net_forward.1} parent=1 // pred_fallthru
      _
    // Predicated region
    $region38: #{net_forward.1} parent=1 // pred_check
      _
    $region39: #{net_forward.1} parent=1 // pred_check_branch
      %443 = sbr.rel (0) target = $region41
    $region40: #{net_forward.1} parent=1 // pred_region
      _
    $region41: #{net_forward.1} parent=1 // pred_fallthru
      _
    %444 = vsyncpa [#allocation4], 1
    %445 = vsyncpa [#allocation6], 1

</llo_original>
